<compile_context>
chip_gen: v7x
topology: tpu7x:2x2x1
jax: 0.10.0
libtpu: 0.0.40
codegen_flags: <defaults>
</compile_context>

<pallas_src>
import numpy as np
import jax
import jax.numpy as jnp
from jax import lax
from jax.experimental import pallas as pl
from jax.experimental.pallas import tpu as pltpu

LEAKY_SLOPE = 0.01   # nn.LeakyReLU default negative_slope
BN_EPS = 1e-5        # nn.BatchNorm2d default eps


def conv_lrelu_bn_kernel(band_ref, w_ref, scale_ref, shift_ref, o_ref):
    """One grid step: 3 accumulated (Cout,3Cin)@(3Cin,TP) dots (one per kh tap,
    row-shifted views of the band), then LeakyReLU + fused BN affine.

    band_ref:  (3*Cin, (TR+2)*W) bf16  kw-stacked input rows incl. 2-row halo
    w_ref:     (3, Cout, 3*Cin)  bf16  w_ref[kh, o, kw*Cin+c] = weight[o,c,kh,kw]
    scale_ref: (Cout, 1) f32           gamma / sqrt(var + eps)
    shift_ref: (Cout, 1) f32           beta - mean * scale
    o_ref:     (Cout, TR*W) f32        lane-dense output tile
    """
    tp = o_ref.shape[-1]                         # TR * W
    w_row = (band_ref.shape[-1] - tp) // 2       # = W (image row width)
    acc = jnp.zeros(o_ref.shape, jnp.float32)
    for kh in range(3):                          # kh taps accumulated in f32
        tap = band_ref[:, kh * w_row: kh * w_row + tp]
        acc = acc + jnp.dot(w_ref[kh], tap, preferred_element_type=jnp.float32)
    # LeakyReLU (max form), BN(eval) affine; Dropout(eval) == identity.
    acc = jnp.maximum(acc, LEAKY_SLOPE * acc)
    o_ref[...] = (acc * scale_ref[...] + shift_ref[...]).astype(o_ref.dtype)


def _pick_row_tile(H, W, K3, Cout, N, budget_bytes=24 << 20):
    """Largest row tile TR (divisor of H) whose double-buffered working set fits
    the VMEM budget and whose output tile is lane-dense (TR*W % 128 == 0); TR==H
    always admissible as fallback.  Prefers a grid with >= 2 instances (v7x)."""
    def fits(tr):
        band = 2 * K3 * (tr + 2) * W * 2          # double-buffered bf16 band
        outb = 2 * Cout * tr * W * 4              # double-buffered f32 out tile
        taps = 3 * K3 * tr * W * 2                # in-kernel tap relayout copies
        return band + outb + taps <= budget_bytes

    candidates = [d for d in range(1, H + 1)
                  if H % d == 0 and (d == H or (d * W) % 128 == 0)]
    valid = [d for d in candidates if fits(d)] or [min(candidates)]
    best = max(valid)
    if N * (H // best) < 2:                       # keep both v7x TCs busy if possible
        multi = [d for d in valid if N * (H // d) >= 2]
        if multi:
            best = max(multi)
    return best
    # TODO(synk): for very large or prime H also split along W (cdiv + masked tail).


def conv_forward(x_nchw, weight, gamma, beta, running_mean, running_var):
    """x_nchw: (N, Cin, H, W) f32.  weight: (Cout, Cin, 3, 3) (PyTorch OIHW)."""
    N, Cin, H, W = x_nchw.shape
    Cout = weight.shape[0]
    K3 = 3 * Cin

    TR = _pick_row_tile(H, W, K3, Cout, N)
    num_tiles = H // TR
    TP = TR * W                   # output pixels per tile (lane axis)
    BAND = (TR + 2) * W           # input pixels per tile incl. 2-row halo

    # ---- XLA-side glue (bf16): pad, kw-stack (3x), overlapping row bands ----
    xp = jnp.pad(x_nchw, ((0, 0), (0, 0), (1, 1), (1, 1)))             # (N,Cin,H+2,W+2)
    xkw = jnp.concatenate([xp[:, :, :, kw:kw + W] for kw in range(3)],
                          axis=1).astype(jnp.bfloat16)                 # (N,3Cin,H+2,W)
    rows = jnp.arange(num_tiles)[:, None] * TR + jnp.arange(TR + 2)[None, :]
    bands = xkw[:, :, rows, :]                                         # (N,3Cin,T,TR+2,W)
    bands = jnp.transpose(bands, (0, 2, 1, 3, 4)).reshape(N, num_tiles, K3, BAND)

    # wk[kh, o, kw*Cin + c] = weight[o, c, kh, kw]  (matches xkw channel order)
    wk = jnp.transpose(weight, (2, 0, 3, 1)).reshape(3, Cout, K3).astype(jnp.bfloat16)

    inv_std = 1.0 / jnp.sqrt(running_var.astype(jnp.float32) + BN_EPS)
    scale = (gamma * inv_std).reshape(Cout, 1).astype(jnp.float32)
    shift = (beta - running_mean * gamma * inv_std).reshape(Cout, 1).astype(jnp.float32)

    # ---- VMEM / cost bookkeeping --------------------------------------------
    block_bytes = 2 * (K3 * BAND * 2 + Cout * TP * 4)      # double-buffered band + out
    scratch_bytes = 3 * K3 * TP * 2 + Cout * TP * 4        # tap copies + f32 acc
    const_bytes = 3 * Cout * K3 * 2 + 4 * Cout * 4
    vmem_limit = int(min(max(2 * (block_bytes + scratch_bytes + const_bytes),
                             16 << 20), 48 << 20))         # < v7x's 64 MiB / TC

    flops = 2 * N * H * W * (9 * Cin) * Cout
    bytes_accessed = int(bands.size * 2 + wk.size * 2 + scale.size * 4 +
                         shift.size * 4 + N * Cout * H * W * 4)

    grid = (N, num_tiles)

    out_flat = pl.pallas_call(
        conv_lrelu_bn_kernel,
        out_shape=jax.ShapeDtypeStruct((N, Cout, H * W), jnp.float32),
        grid_spec=pltpu.PrefetchScalarGridSpec(
            num_scalar_prefetch=0,
            grid=grid,
            in_specs=[
                pl.BlockSpec((None, None, K3, BAND), lambda n, r: (n, r, 0, 0)),  # band
                pl.BlockSpec((3, Cout, K3), lambda n, r: (0, 0, 0)),              # weights
                pl.BlockSpec((Cout, 1), lambda n, r: (0, 0)),                     # BN scale
                pl.BlockSpec((Cout, 1), lambda n, r: (0, 0)),                     # BN shift
            ],
            out_specs=pl.BlockSpec((None, Cout, TP), lambda n, r: (n, 0, r)),
        ),
        compiler_params=pltpu.CompilerParams(
            dimension_semantics=("parallel", "parallel"),
            vmem_limit_bytes=vmem_limit,
        ),
        cost_estimate=pl.CostEstimate(
            flops=flops, transcendentals=0, bytes_accessed=bytes_accessed),
    )(bands, wk, scale, shift)

    # Trailing-dim split only: no HBM transpose.
    return out_flat.reshape(N, Cout, H, W)


def reference(x_nchw, weight, gamma, beta, running_mean, running_var):
    """Pure-JAX reference (XLA conv) for correctness check."""
    y = lax.conv_general_dilated(
        x_nchw, weight, window_strides=(1, 1), padding=((1, 1), (1, 1)),
        dimension_numbers=("NCHW", "OIHW", "NCHW"))
    y = jnp.where(y >= 0, y, LEAKY_SLOPE * y)
    inv_std = 1.0 / jnp.sqrt(running_var + BN_EPS)
    scale = (gamma * inv_std).reshape(1, -1, 1, 1)
    shift = (beta - running_mean * gamma * inv_std).reshape(1, -1, 1, 1)
    return y * scale + shift


def _run_case(key, N, Cin, Cout, H, W):
    ks = jax.random.split(key, 6)
    x = jax.random.normal(ks[0], (N, Cin, H, W), dtype=jnp.float32)
    weight = jax.random.normal(ks[1], (Cout, Cin, 3, 3), dtype=jnp.float32) * 0.1
    gamma = jax.random.uniform(ks[2], (Cout,), jnp.float32, 0.5, 1.5)
    beta = jax.random.normal(ks[3], (Cout,), jnp.float32) * 0.1
    running_mean = jax.random.normal(ks[4], (Cout,), jnp.float32) * 0.1
    running_var = jax.random.uniform(ks[5], (Cout,), jnp.float32, 0.5, 1.5)

    out = jax.jit(conv_forward)(x, weight, gamma, beta, running_mean, running_var)
    out = jax.block_until_ready(out)
    assert out.shape == (N, Cout, H, W)

    ref = reference(x, weight, gamma, beta, running_mean, running_var)
    # bf16 patch/weight streams -> relaxed tolerance (f32 accumulation in the dot).
    np.testing.assert_allclose(np.asarray(out), np.asarray(ref),
                               rtol=3e-2, atol=3e-2)


if __name__ == "__main__":
    dropout_p = 0.1  # unused: Dropout is identity in eval-mode forward

    key = jax.random.PRNGKey(0)
    k0, k1, k2 = jax.random.split(key, 3)

    # Module-consistent small shape (batch=2, channels 4->8, 16x16): grid (2, 1).
    _run_case(k0, N=2, Cin=4, Cout=8, H=16, W=16)
    # Larger spatial size: row-tiled grid (1, 2) with lane-dense 1152-pixel tiles.
    _run_case(k1, N=1, Cin=4, Cout=8, H=48, W=48)
    # Odd channel counts / non-multiple-of-128 spatial size: whole-image fallback tile.
    _run_case(k2, N=1, Cin=3, Cout=5, H=12, W=12)

    print("KERNEL_OK")
</pallas_src>

<mosaic_0001>
module attributes {stable_mosaic.version = 11 : i64} {
  func.func @conv_lrelu_bn_kernel(%arg0: i32, %arg1: i32, %arg2: memref<1x1x12x288xbf16, #tpu.memory_space<vmem>>, %arg3: memref<3x8x12xbf16, #tpu.memory_space<vmem>>, %arg4: memref<8x1xf32, #tpu.memory_space<vmem>>, %arg5: memref<8x1xf32, #tpu.memory_space<vmem>>, %arg6: memref<1x8x256xf32, #tpu.memory_space<vmem>>) attributes {dimension_semantics = [#tpu.dimension_semantics<parallel>, #tpu.dimension_semantics<parallel>], iteration_bounds = array<i64: 2, 1>, scalar_prefetch = 0 : i64, scratch_operands = 0 : i64, tpu.core_type = #tpu.core_type<tc>, window_params = [{transform_indices = @transform_0, window_bounds = array<i64: 1, 1, 12, 288>}, {pipeline_mode = #tpu.pipeline_mode<synchronous>, transform_indices = @transform_1, window_bounds = array<i64: 3, 8, 12>}, {pipeline_mode = #tpu.pipeline_mode<synchronous>, transform_indices = @transform_2, window_bounds = array<i64: 8, 1>}, {pipeline_mode = #tpu.pipeline_mode<synchronous>, transform_indices = @transform_3, window_bounds = array<i64: 8, 1>}, {transform_indices = @transform_4, window_bounds = array<i64: 1, 8, 256>}]} {
    %cst = arith.constant 0.000000e+00 : f32
    %0 = vector.broadcast %cst : f32 to vector<8x256xf32>
    %c0 = arith.constant 0 : index
    %c0_0 = arith.constant 0 : index
    %c0_1 = arith.constant 0 : index
    %c0_2 = arith.constant 0 : index
    %1 = vector.load %arg2[%c0, %c0_0, %c0_1, %c0_2] : memref<1x1x12x288xbf16, #tpu.memory_space<vmem>>, vector<1x1x12x256xbf16>
    %2 = vector.shape_cast %1 : vector<1x1x12x256xbf16> to vector<12x256xbf16>
    %c0_3 = arith.constant 0 : index
    %c0_4 = arith.constant 0 : index
    %c0_5 = arith.constant 0 : index
    %3 = vector.load %arg3[%c0_3, %c0_4, %c0_5] : memref<3x8x12xbf16, #tpu.memory_space<vmem>>, vector<1x8x12xbf16>
    %4 = vector.shape_cast %3 : vector<1x8x12xbf16> to vector<8x12xbf16>
    %cst_6 = arith.constant dense<0.000000e+00> : vector<8x256xf32>
    %5 = tpu.matmul %4, %2, %cst_6 {dimension_numbers = #tpu.dot_dimension_numbers<[1], [0], [0], [1], [0, 0, 1, 1], [], []>} : vector<8x12xbf16>, vector<12x256xbf16>, vector<8x256xf32> -> vector<8x256xf32>
    %6 = arith.addf %0, %5 : vector<8x256xf32>
    %c0_7 = arith.constant 0 : index
    %c0_8 = arith.constant 0 : index
    %c0_9 = arith.constant 0 : index
    %c16 = arith.constant 16 : index
    %7 = vector.load %arg2[%c0_7, %c0_8, %c0_9, %c16] : memref<1x1x12x288xbf16, #tpu.memory_space<vmem>>, vector<1x1x12x256xbf16>
    %8 = vector.shape_cast %7 : vector<1x1x12x256xbf16> to vector<12x256xbf16>
    %c1 = arith.constant 1 : index
    %c0_10 = arith.constant 0 : index
    %c0_11 = arith.constant 0 : index
    %9 = vector.load %arg3[%c1, %c0_10, %c0_11] : memref<3x8x12xbf16, #tpu.memory_space<vmem>>, vector<1x8x12xbf16>
    %10 = vector.shape_cast %9 : vector<1x8x12xbf16> to vector<8x12xbf16>
    %cst_12 = arith.constant dense<0.000000e+00> : vector<8x256xf32>
    %11 = tpu.matmul %10, %8, %cst_12 {dimension_numbers = #tpu.dot_dimension_numbers<[1], [0], [0], [1], [0, 0, 1, 1], [], []>} : vector<8x12xbf16>, vector<12x256xbf16>, vector<8x256xf32> -> vector<8x256xf32>
    %12 = arith.addf %6, %11 : vector<8x256xf32>
    %c0_13 = arith.constant 0 : index
    %c0_14 = arith.constant 0 : index
    %c0_15 = arith.constant 0 : index
    %c32 = arith.constant 32 : index
    %13 = vector.load %arg2[%c0_13, %c0_14, %c0_15, %c32] : memref<1x1x12x288xbf16, #tpu.memory_space<vmem>>, vector<1x1x12x256xbf16>
    %14 = vector.shape_cast %13 : vector<1x1x12x256xbf16> to vector<12x256xbf16>
    %c2 = arith.constant 2 : index
    %c0_16 = arith.constant 0 : index
    %c0_17 = arith.constant 0 : index
    %15 = vector.load %arg3[%c2, %c0_16, %c0_17] : memref<3x8x12xbf16, #tpu.memory_space<vmem>>, vector<1x8x12xbf16>
    %16 = vector.shape_cast %15 : vector<1x8x12xbf16> to vector<8x12xbf16>
    %cst_18 = arith.constant dense<0.000000e+00> : vector<8x256xf32>
    %17 = tpu.matmul %16, %14, %cst_18 {dimension_numbers = #tpu.dot_dimension_numbers<[1], [0], [0], [1], [0, 0, 1, 1], [], []>} : vector<8x12xbf16>, vector<12x256xbf16>, vector<8x256xf32> -> vector<8x256xf32>
    %18 = arith.addf %12, %17 : vector<8x256xf32>
    %cst_19 = arith.constant 0.00999999977 : f32
    %19 = vector.broadcast %cst_19 : f32 to vector<8x256xf32>
    %20 = arith.mulf %19, %18 : vector<8x256xf32>
    %21 = arith.maximumf %18, %20 : vector<8x256xf32>
    %c0_20 = arith.constant 0 : index
    %c0_21 = arith.constant 0 : index
    %22 = vector.load %arg4[%c0_20, %c0_21] : memref<8x1xf32, #tpu.memory_space<vmem>>, vector<8x1xf32>
    %23 = vector.broadcast %22 : vector<8x1xf32> to vector<8x256xf32>
    %24 = arith.mulf %21, %23 : vector<8x256xf32>
    %c0_22 = arith.constant 0 : index
    %c0_23 = arith.constant 0 : index
    %25 = vector.load %arg5[%c0_22, %c0_23] : memref<8x1xf32, #tpu.memory_space<vmem>>, vector<8x1xf32>
    %26 = vector.broadcast %25 : vector<8x1xf32> to vector<8x256xf32>
    %27 = arith.addf %24, %26 : vector<8x256xf32>
    %c0_24 = arith.constant 0 : index
    %c0_25 = arith.constant 0 : index
    %c0_26 = arith.constant 0 : index
    %28 = vector.load %arg6[%c0_24, %c0_25, %c0_26] : memref<1x8x256xf32, #tpu.memory_space<vmem>>, vector<1x8x256xf32>
    %29 = vector.shape_cast %28 : vector<1x8x256xf32> to vector<8x256xf32>
    %30 = vector.shape_cast %27 : vector<8x256xf32> to vector<1x8x256xf32>
    tpu.vector_store %arg6[%c0_24, %c0_25, %c0_26], %30 {strides = array<i32>} : memref<1x8x256xf32, #tpu.memory_space<vmem>>, vector<1x8x256xf32>,
    return
  }
  func.func @transform_0(%arg0: i32, %arg1: i32) -> (i32, i32, i32, i32) {
    %c0_i32 = arith.constant 0 : i32
    %c0_i32_0 = arith.constant 0 : i32
    %c0_i32_1 = arith.constant 0 : i32
    return %arg0, %arg1, %c0_i32, %c0_i32_0 : i32, i32, i32, i32
  }
  func.func @transform_1(%arg0: i32, %arg1: i32) -> (i32, i32, i32) {
    %c0_i32 = arith.constant 0 : i32
    %c0_i32_0 = arith.constant 0 : i32
    %c0_i32_1 = arith.constant 0 : i32
    %c0_i32_2 = arith.constant 0 : i32
    return %c0_i32, %c0_i32_0, %c0_i32_1 : i32, i32, i32
  }
  func.func @transform_2(%arg0: i32, %arg1: i32) -> (i32, i32) {
    %c0_i32 = arith.constant 0 : i32
    %c0_i32_0 = arith.constant 0 : i32
    %c0_i32_1 = arith.constant 0 : i32
    return %c0_i32, %c0_i32_0 : i32, i32
  }
  func.func @transform_3(%arg0: i32, %arg1: i32) -> (i32, i32) {
    %c0_i32 = arith.constant 0 : i32
    %c0_i32_0 = arith.constant 0 : i32
    %c0_i32_1 = arith.constant 0 : i32
    return %c0_i32, %c0_i32_0 : i32, i32
  }
  func.func @transform_4(%arg0: i32, %arg1: i32) -> (i32, i32, i32) {
    %c0_i32 = arith.constant 0 : i32
    %c0_i32_0 = arith.constant 0 : i32
    return %arg0, %c0_i32, %arg1 : i32, i32, i32
  }
}

</mosaic_0001>

<llo_original>
// kernel: conv_forward.1
$region0: #{conv_forward.1}
  #allocation0 [shape = 'u32[]', space=smem, size = 0x4, offset = 0x4, fixed_abs, tag = 'smem constant byte address 0x4 - core index']
  #allocation1 [shape = 'u32[144,128]{1,0:T(1,128)}', space=vmem, size = 0x12000, scoped, tag = 'internal scratch']
  %s0 = inlined_call_operand.vmem [shape: bf16[2,1,12,288], index: 0, kind: input, shape index: {}]
  %s1 = inlined_call_operand.vmem [shape: bf16[3,8,12], index: 1, kind: input, shape index: {}]
  %s2 = inlined_call_operand.vmem [shape: f32[8,1], index: 2, kind: input, shape index: {}]
  %s3 = inlined_call_operand.vmem [shape: f32[8,1], index: 3, kind: input, shape index: {}]
  %s4 = inlined_call_operand.vmem [shape: f32[2,8,256], index: 4, kind: output, shape index: {}]
  %s5 = sld [smem:[#allocation0]]
  $region49: #{conv_forward.1} parent=0
    _
  %s7 = ssub.s32 1, %s5
  %s8 = scalar_select 0, %s7, %s5
  loop: start=0, step=1, limit=4
  $region2: #{conv_forward.1} parent=0 // loop_pre_header
    _
  $region3: #{conv_forward.1} parent=0 // loop_header
    %s10 = sphi 0, %s14
    %p11 = scmp.ge.s32.totalorder %s10, 4
    %s17 = sphi 0, %s29
    %s18 = sphi 0, %s25
    %s19 = sphi 0, %s17
    %s20 = sphi 0, %s18
    %s21 = sphi 0, %s19
    %s22 = sphi 0, %s20
    %s34 = sphi 0, %s36
    %s37 = sphi 0, %s34
    %s38 = sphi 0, %s37
    %s54 = sphi 0, %s38
    %s58 = sphi 0, %s58
    %s60 = sphi 0, %s58
    %s61 = sphi 0, %s60
    %s75 = sphi 0, %s61
    %s79 = sphi 0, %s79
    %s81 = sphi 0, %s79
    %s82 = sphi 0, %s81
    %s96 = sphi 0, %s82
    %s100 = sphi 0, %s100
    %s102 = sphi 0, %s100
    %s103 = sphi 0, %s102
    %s117 = sphi 0, %s103
    %s125 = sphi 0, %s127
    %s128 = sphi 0, %s125
    %s129 = sphi 0, %s128
    %s145 = sphi 0, %s129
  $region4: #{conv_forward.1} parent=0 // loop_header_branch
    %13 = sbr.rel (%p11) target = $region8
  $region5: #{conv_forward.1} parent=0 // loop_body
    %s15 = ssub.s32 %s10, 1
    %s16 = ssub.s32 %s10, 2
    %s23 = sadd.s32 1, %s18
    %p24 = scmp.ge.s32.totalorder %s23, 1
    %s25 = scalar_select %p24, 0, %s23
    %s26 = sadd.s32 1, %s17
    %s27 = scalar_select %p24, %s26, %s17
    %p28 = scmp.ge.s32.totalorder %s27, 2
    %s29 = scalar_select %p28, 0, %s27
    %s30 = ssub.s32 %s17, %s29
    %s31 = ssub.s32 %s18, %s25
    %s32 = sor.u32 %s30, %s31
    %p33 = scmp.eq.s32.totalorder %s32, 0
    %s35 = sadd.s32 %s34, 1
    %s36 = scalar_select %p33, %s34, %s35
    %p39 = pneg %p33
    %p40 = scmp.eq.s32.totalorder %s10, 1
    %p41 = por %p39, %p40
    %p42 = scmp.ne.s32.totalorder %s34, %s37
    %p43 = scmp.eq.s32.totalorder %s10, 0
    %p44 = por %p42, %p43
    %p45 = scmp.ne.s32.totalorder %s34, %s37
    %p46 = scmp.eq.s32.totalorder %s15, 1
    %p47 = por %p45, %p46
    %p48 = scmp.ne.s32.totalorder %s37, %s38
    %p49 = scmp.eq.s32.totalorder %s15, 0
    %p50 = por %p48, %p49
    %p51 = scmp.ne.s32.totalorder %s37, %s38
    %p52 = scmp.eq.s32.totalorder %s16, 1
    %p53 = por %p51, %p52
    %p55 = scmp.ne.s32.totalorder %s38, %s54
    %p56 = scmp.eq.s32.totalorder %s16, 0
    %p57 = por %p55, %p56
    %s59 = sadd.s32 %s58, 1
    %p62 = scmp.eq.s32.totalorder %s10, 1
    %p63 = scmp.ne.s32.totalorder %s58, %s60
    %p64 = scmp.eq.s32.totalorder %s10, 0
    %p65 = por %p63, %p64
    %p66 = scmp.ne.s32.totalorder %s58, %s60
    %p67 = scmp.eq.s32.totalorder %s15, 1
    %p68 = por %p66, %p67
    %p69 = scmp.ne.s32.totalorder %s60, %s61
    %p70 = scmp.eq.s32.totalorder %s15, 0
    %p71 = por %p69, %p70
    %p72 = scmp.ne.s32.totalorder %s60, %s61
    %p73 = scmp.eq.s32.totalorder %s16, 1
    %p74 = por %p72, %p73
    %p76 = scmp.ne.s32.totalorder %s61, %s75
    %p77 = scmp.eq.s32.totalorder %s16, 0
    %p78 = por %p76, %p77
    %s80 = sadd.s32 %s79, 1
    %p83 = scmp.eq.s32.totalorder %s10, 1
    %p84 = scmp.ne.s32.totalorder %s79, %s81
    %p85 = scmp.eq.s32.totalorder %s10, 0
    %p86 = por %p84, %p85
    %p87 = scmp.ne.s32.totalorder %s79, %s81
    %p88 = scmp.eq.s32.totalorder %s15, 1
    %p89 = por %p87, %p88
    %p90 = scmp.ne.s32.totalorder %s81, %s82
    %p91 = scmp.eq.s32.totalorder %s15, 0
    %p92 = por %p90, %p91
    %p93 = scmp.ne.s32.totalorder %s81, %s82
    %p94 = scmp.eq.s32.totalorder %s16, 1
    %p95 = por %p93, %p94
    %p97 = scmp.ne.s32.totalorder %s82, %s96
    %p98 = scmp.eq.s32.totalorder %s16, 0
    %p99 = por %p97, %p98
    %s101 = sadd.s32 %s100, 1
    %p104 = scmp.eq.s32.totalorder %s10, 1
    %p105 = scmp.ne.s32.totalorder %s100, %s102
    %p106 = scmp.eq.s32.totalorder %s10, 0
    %p107 = por %p105, %p106
    %p108 = scmp.ne.s32.totalorder %s100, %s102
    %p109 = scmp.eq.s32.totalorder %s15, 1
    %p110 = por %p108, %p109
    %p111 = scmp.ne.s32.totalorder %s102, %s103
    %p112 = scmp.eq.s32.totalorder %s15, 0
    %p113 = por %p111, %p112
    %p114 = scmp.ne.s32.totalorder %s102, %s103
    %p115 = scmp.eq.s32.totalorder %s16, 1
    %p116 = por %p114, %p115
    %p118 = scmp.ne.s32.totalorder %s103, %s117
    %p119 = scmp.eq.s32.totalorder %s16, 0
    %p120 = por %p118, %p119
    %s121 = ssub.s32 %s17, %s29
    %s122 = ssub.s32 %s18, %s25
    %s123 = sor.u32 %s121, %s122
    %p124 = scmp.eq.s32.totalorder %s123, 0
    %s126 = sadd.s32 %s125, 1
    %s127 = scalar_select %p124, %s125, %s126
    %p130 = pneg %p124
    %p131 = scmp.eq.s32.totalorder %s10, 1
    %p132 = por %p130, %p131
    %p133 = scmp.ne.s32.totalorder %s125, %s128
    %p134 = scmp.eq.s32.totalorder %s10, 0
    %p135 = por %p133, %p134
    %p136 = scmp.ne.s32.totalorder %s125, %s128
    %p137 = scmp.eq.s32.totalorder %s15, 1
    %p138 = por %p136, %p137
    %p139 = scmp.ne.s32.totalorder %s128, %s129
    %p140 = scmp.eq.s32.totalorder %s15, 0
    %p141 = por %p139, %p140
    %p142 = scmp.ne.s32.totalorder %s128, %s129
    %p143 = scmp.eq.s32.totalorder %s16, 1
    %p144 = por %p142, %p143
    %p146 = scmp.ne.s32.totalorder %s129, %s145
    %p147 = scmp.eq.s32.totalorder %s16, 0
    %p148 = por %p146, %p147
    %p149 = scmp.le.s32.totalorder 1, %s10
    %p150 = scmp.lt.s32.totalorder %s10, 3
    %p151 = pnand %p149, %p150
    %p152 = pneg %p151
    // Predicated region
    $region9: #{conv_forward.1} parent=5 // pred_check
      _
    $region10: #{conv_forward.1} parent=5 // pred_check_branch
      %154 = sbr.rel (%p151) target = $region12
    $region11: #{conv_forward.1} parent=5 // pred_region
      %s155 = ssub.s32 %s10, 1
      // Predicated region
      $region13: #{conv_forward.1} parent=11 // pred_check
        %p156 = pneg %p71
      $region14: #{conv_forward.1} parent=11 // pred_check_branch
        %158 = sbr.rel (%p156) target = $region16
      $region15: #{conv_forward.1} parent=11 // pred_region
        _
      $region16: #{conv_forward.1} parent=11 // pred_fallthru
        _
      // Predicated region
      $region17: #{conv_forward.1} parent=11 // pred_check
        %p159 = pneg %p92
      $region18: #{conv_forward.1} parent=11 // pred_check_branch
        %161 = sbr.rel (%p159) target = $region20
      $region19: #{conv_forward.1} parent=11 // pred_region
        _
      $region20: #{conv_forward.1} parent=11 // pred_fallthru
        _
      // Predicated region
      $region21: #{conv_forward.1} parent=11 // pred_check
        %p162 = pneg %p113
      $region22: #{conv_forward.1} parent=11 // pred_check_branch
        %164 = sbr.rel (%p162) target = $region24
      $region23: #{conv_forward.1} parent=11 // pred_region
        _
      $region24: #{conv_forward.1} parent=11 // pred_fallthru
        _
    $region12: #{conv_forward.1} parent=5 // pred_fallthru
      _
    %p165 = scmp.lt.s32.totalorder %s10, 2
    // Predicated region
    $region25: #{conv_forward.1} parent=5 // pred_check
      %p166 = pneg %p165
    $region26: #{conv_forward.1} parent=5 // pred_check_branch
      %168 = sbr.rel (%p166) target = $region28
    $region27: #{conv_forward.1} parent=5 // pred_region
      // Predicated region
      $region29: #{conv_forward.1} parent=27 // pred_check
        %p169 = pneg %p44
      $region30: #{conv_forward.1} parent=27 // pred_check_branch
        %171 = sbr.rel (%p169) target = $region32
      $region31: #{conv_forward.1} parent=27 // pred_region
        %p172 = scmp.lt.s32.totalorder %s17, 1
        %s173 = scalar_select %p172, %s17, 1
        %p174 = scmp.lt.s32.totalorder %s18, 0
        %s175 = scalar_select %p174, %s18, 0
        %s176 = smul.addr %s175, 6
        %s177 = smul.addr %s173, 6
        %s178 = sadd.s32 %s176, %s177
        %s179 = smul.addr %s178, 4
        %s180 = scalar_lea.vmem %s0, %s179
      $region32: #{conv_forward.1} parent=27 // pred_fallthru
        _
    $region28: #{conv_forward.1} parent=5 // pred_fallthru
      _
    %p181 = scmp.le.s32.totalorder 1, %s10
    %p182 = scmp.lt.s32.totalorder %s10, 3
    %p183 = pnand %p181, %p182
    %p184 = pneg %p183
    // Predicated region
    $region33: #{conv_forward.1} parent=5 // pred_check
      _
    $region34: #{conv_forward.1} parent=5 // pred_check_branch
      %186 = sbr.rel (%p183) target = $region36
    $region35: #{conv_forward.1} parent=5 // pred_region
      %s187 = ssub.s32 %s10, 1
      %p188 = scmp.lt.s32.totalorder %s19, 1
      %s189 = scalar_select %p188, %s19, 1
      %p190 = scmp.lt.s32.totalorder %s20, 0
      %s191 = scalar_select %p190, %s20, 0
      %s192 = smul.addr %s191, 6
      %s193 = smul.addr %s189, 6
      %s194 = sadd.s32 %s192, %s193
      %s195 = smul.addr %s194, 4
      %s196 = scalar_lea.vmem %s0, %s195
      %p197 = pneg %p50
      %p198 = pneg %p47
      %p199 = pneg %p71
      %p200 = pneg %p68
      %p201 = pneg %p92
      %p202 = pneg %p89
      %p203 = pneg %p113
      %p204 = pneg %p110
      %p205 = pneg %p141
      %p206 = pneg %p138
      %s207 = smul.u32 2, %s20
      %p208 = scmp.lt.s32.totalorder %s19, 1
      %s209 = scalar_select %p208, %s19, 1
      %p210 = scmp.lt.s32.totalorder %s207, 1
      %s211 = scalar_select %p210, %s207, 1
      %s212 = smul.addr %s209, 2
      %s213 = sadd.s32 %s211, %s212
      %s214 = smul.addr %s213, 8
      %s215 = scalar_lea.vmem %s4, %s214
      %p216 = scmp.lt.s32.totalorder %s19, 1
      %s217 = scalar_select %p216, %s19, 1
      %p218 = scmp.lt.s32.totalorder %s20, 0
      %s219 = scalar_select %p218, %s20, 0
      %s220 = smul.addr %s219, 6
      %s221 = smul.addr %s217, 6
      %s222 = sadd.s32 %s220, %s221
      %s223 = smul.addr %s222, 4
      %s224 = scalar_lea.vmem %s0, %s223
      %s225 = smul.u32 2, %s20
      %p226 = scmp.lt.s32.totalorder %s19, 1
      %s227 = scalar_select %p226, %s19, 1
      %p228 = scmp.lt.s32.totalorder %s225, 1
      %s229 = scalar_select %p228, %s225, 1
      %s230 = smul.addr %s227, 2
      %s231 = sadd.s32 %s229, %s230
      %s232 = smul.addr %s231, 8
      %s233 = scalar_lea.vmem %s4, %s232
      %s234 = smul.u32 2, %s20
      %v236 = vld [vmem:[%s224] sm:$0xff]
      %v237 = vld [vmem:[%s224 + $0xc] sm:$0x33]
      %v238 = vld [vmem:[%s1] sm:$0xf]
      %v239 = vld [vmem:[%s224 + $0x8] sm:$0xf]
      %v240 = vld [vmem:[%s224 + $0x14] sm:$0x3]
      %s241 = scalar_lea.vmem %s1, 4
      %v242 = vld [vmem:[%s241] sm:$0xf]
      %v247 = vunpack.c.l.b16 %v236
      %v248 = vunpack.c.h.b16 %v236
      %v249 = vunpack.c.l.b16 %v239
      %v250 = vunpack.c.l.b16 %v237
      %v251 = vunpack.c.h.b16 %v237
      %v252 = vunpack.c.l.b16 %v240
      %v253 = vpack.c.b16 %v250, %v247
      %v254 = vpack.c.b16 %v251, %v248
      %v255 = vpack.c.b16 %v252, %v249
      %256 = vrot.lane.b32.xlu0 %v253, 112
      %v257 = vpop.permute.xlu0 %256
      %258 = vrot.lane.b32.xlu0 %v254, 112
      %v259 = vpop.permute.xlu0 %258
      %260 = vrot.lane.b32.xlu0 %v255, 112
      %v261 = vpop.permute.xlu0 %260
      %vm262 = vcmask 916480
      %v263 = vsel %vm262, %v257, %v259
      %v264 = vsel %vm262, %v259, %v261
      %vm265 = vcmask 97280
      %v267 = vsel %vm265, %v242, 0
      %vm269 = vcmask 1045504
      %v271 = vsel %vm269, %v263, 0
      %v274 = vsel %vm269, %v264, 0
      %276 = vmatprep.subr.bf16.mxu0 %v274
      %277 = vmatpush1.bf16.msra.mxu0 %v271
      %278 = vmatprep.subr.bf16.mxu0 0
      %279 = vmatpush1.bf16.msra.mxu0 0
      %280 = vmatprep.subr.bf16.mxu0 0
      %281 = vmatpush1.bf16.msra.mxu0 0
      %282 = vmatprep.subr.bf16.mxu0 0
      %283 = vmatpush1.bf16.msra.mxu0 0
      %284 = vmatprep.subr.bf16.mxu0 0
      %285 = vmatpush1.bf16.msra.mxu0 0
      %286 = vmatprep.subr.bf16.mxu0 0
      %287 = vmatpush1.bf16.msra.mxu0 0
      %288 = vmatprep.subr.bf16.mxu0 0
      %289 = vmatpush1.bf16.msra.mxu0 0
      %290 = vmatprep.subr.bf16.mxu0 0
      %291 = vmatpush1.bf16.msra.mxu0 0
      %292 = vmatprep.subr.bf16.mxu0 0
      %293 = vmatpush1.bf16.msra.mxu0 0
      %294 = vmatprep.subr.bf16.mxu0 0
      %295 = vmatpush1.bf16.msra.mxu0 0
      %296 = vmatprep.subr.bf16.mxu0 0
      %297 = vmatpush1.bf16.msra.mxu0 0
      %298 = vmatprep.subr.bf16.mxu0 0
      %299 = vmatpush1.bf16.msra.mxu0 0
      %300 = vmatprep.subr.bf16.mxu0 0
      %301 = vmatpush1.bf16.msra.mxu0 0
      %302 = vmatprep.subr.bf16.mxu0 0
      %303 = vmatpush1.bf16.msra.mxu0 0
      %304 = vmatprep.subr.bf16.mxu0 0
      %305 = vmatpush1.bf16.msra.mxu0 0
      %306 = vmatprep.subr.bf16.mxu0 0
      %307 = vmatpush1.bf16.msra.mxu0 0
      %308 = vmatprep.mubr.bf16.mxu0 0
      %309 = vmatmul.mubr.bf16.gmra.mrb[0].mxu0 %v267
      %v310 = vpop.f32.mrb[0].mxu0
      %v311 = vadd.f32 0.0, %v310
      %v312 = vpop.f32.mrb[0].mxu0
      %v313 = vadd.f32 0.0, %v312
      %v314 = vpop.f32.mrb[0].mxu0
      %v315 = vpop.f32.mrb[0].mxu0
      %316 = vdwg.mxu0
      %v318 = vsel %vm265, %v238, 0
      %v321 = vsel %vm269, %v253, 0
      %v324 = vsel %vm269, %v254, 0
      %326 = vmatprep.subr.bf16.mxu0 %v324
      %327 = vmatpush1.bf16.msra.mxu0 %v321
      %328 = vmatprep.subr.bf16.mxu0 0
      %329 = vmatpush1.bf16.msra.mxu0 0
      %330 = vmatprep.subr.bf16.mxu0 0
      %331 = vmatpush1.bf16.msra.mxu0 0
      %332 = vmatprep.subr.bf16.mxu0 0
      %333 = vmatpush1.bf16.msra.mxu0 0
      %334 = vmatprep.subr.bf16.mxu0 0
      %335 = vmatpush1.bf16.msra.mxu0 0
      %336 = vmatprep.subr.bf16.mxu0 0
      %337 = vmatpush1.bf16.msra.mxu0 0
      %338 = vmatprep.subr.bf16.mxu0 0
      %339 = vmatpush1.bf16.msra.mxu0 0
      %340 = vmatprep.subr.bf16.mxu0 0
      %341 = vmatpush1.bf16.msra.mxu0 0
      %342 = vmatprep.subr.bf16.mxu0 0
      %343 = vmatpush1.bf16.msra.mxu0 0
      %344 = vmatprep.subr.bf16.mxu0 0
      %345 = vmatpush1.bf16.msra.mxu0 0
      %346 = vmatprep.subr.bf16.mxu0 0
      %347 = vmatpush1.bf16.msra.mxu0 0
      %348 = vmatprep.subr.bf16.mxu0 0
      %349 = vmatpush1.bf16.msra.mxu0 0
      %350 = vmatprep.subr.bf16.mxu0 0
      %351 = vmatpush1.bf16.msra.mxu0 0
      %352 = vmatprep.subr.bf16.mxu0 0
      %353 = vmatpush1.bf16.msra.mxu0 0
      %354 = vmatprep.subr.bf16.mxu0 0
      %355 = vmatpush1.bf16.msra.mxu0 0
      %356 = vmatprep.subr.bf16.mxu0 0
      %357 = vmatpush1.bf16.msra.mxu0 0
      %358 = vmatprep.mubr.bf16.mxu0 0
      %359 = vmatmul.mubr.bf16.gmra.mrb[0].mxu0 %v318
      %v360 = vpop.f32.mrb[0].mxu0
      %v361 = vadd.f32 %v311, %v360
      %v362 = vpop.f32.mrb[0].mxu0
      %v363 = vadd.f32 %v313, %v362
      %v364 = vpop.f32.mrb[0].mxu0
      %v365 = vpop.f32.mrb[0].mxu0
      %366 = vdwg.mxu0
      %s367 = scalar_lea.vmem %s1, 8
      %v368 = vld [vmem:[%s367] sm:$0xf]
      %369 = vrot.lane.b32.xlu0 %v253, 96
      %v370 = vpop.permute.xlu0 %369
      %371 = vrot.lane.b32.xlu0 %v254, 96
      %v372 = vpop.permute.xlu0 %371
      %373 = vrot.lane.b32.xlu0 %v255, 96
      %v374 = vpop.permute.xlu0 %373
      %vm375 = vcmask 785408
      %v376 = vsel %vm375, %v370, %v372
      %v377 = vsel %vm375, %v372, %v374
      %v379 = vsel %vm265, %v368, 0
      %v382 = vsel %vm269, %v376, 0
      %v385 = vsel %vm269, %v377, 0
      %387 = vmatprep.subr.bf16.mxu0 %v385
      %388 = vmatpush1.bf16.msra.mxu0 %v382
      %389 = vmatprep.subr.bf16.mxu0 0
      %390 = vmatpush1.bf16.msra.mxu0 0
      %391 = vmatprep.subr.bf16.mxu0 0
      %392 = vmatpush1.bf16.msra.mxu0 0
      %393 = vmatprep.subr.bf16.mxu0 0
      %394 = vmatpush1.bf16.msra.mxu0 0
      %395 = vmatprep.subr.bf16.mxu0 0
      %396 = vmatpush1.bf16.msra.mxu0 0
      %397 = vmatprep.subr.bf16.mxu0 0
      %398 = vmatpush1.bf16.msra.mxu0 0
      %399 = vmatprep.subr.bf16.mxu0 0
      %400 = vmatpush1.bf16.msra.mxu0 0
      %401 = vmatprep.subr.bf16.mxu0 0
      %402 = vmatpush1.bf16.msra.mxu0 0
      %403 = vmatprep.subr.bf16.mxu0 0
      %404 = vmatpush1.bf16.msra.mxu0 0
      %405 = vmatprep.subr.bf16.mxu0 0
      %406 = vmatpush1.bf16.msra.mxu0 0
      %407 = vmatprep.subr.bf16.mxu0 0
      %408 = vmatpush1.bf16.msra.mxu0 0
      %409 = vmatprep.subr.bf16.mxu0 0
      %410 = vmatpush1.bf16.msra.mxu0 0
      %411 = vmatprep.subr.bf16.mxu0 0
      %412 = vmatpush1.bf16.msra.mxu0 0
      %413 = vmatprep.subr.bf16.mxu0 0
      %414 = vmatpush1.bf16.msra.mxu0 0
      %415 = vmatprep.subr.bf16.mxu0 0
      %416 = vmatpush1.bf16.msra.mxu0 0
      %417 = vmatprep.subr.bf16.mxu0 0
      %418 = vmatpush1.bf16.msra.mxu0 0
      %419 = vmatprep.mubr.bf16.mxu0 0
      %420 = vmatmul.mubr.bf16.gmra.mrb[0].mxu0 %v379
      %v421 = vpop.f32.mrb[0].mxu0
      %v422 = vadd.f32 0.0, %v421
      %v423 = vpop.f32.mrb[0].mxu0
      %v424 = vadd.f32 0.0, %v423
      %v425 = vpop.f32.mrb[0].mxu0
      %v426 = vpop.f32.mrb[0].mxu0
      %427 = vdwg.mxu0
      %v428 = vadd.f32 %v361, %v422
      %v429 = vadd.f32 %v363, %v424
      %v430 = vmul.f32 %v428, 0.01
      %v431 = vmul.f32 %v429, 0.01
      %v432 = vmax.f32 %v428, %v430
      %v433 = vmax.f32 %v429, %v431
      %v434 = vld [vmem:[%s2] sm:$0xff]
      %436 = vset.pattern.permute.xlu0 0
      %437 = vperm.xlu0 %436, %v434
      %v438 = vpop.permute.xlu0 %437
      %v440 = vmul.f32 %v432, %v438
      %v441 = vmul.f32 %v433, %v438
      %v442 = vld [vmem:[%s3] sm:$0xff]
      %444 = vset.pattern.permute.xlu0 0
      %445 = vperm.xlu0 %444, %v442
      %v446 = vpop.permute.xlu0 %445
      %v448 = vadd.f32 %v440, %v446
      %v449 = vadd.f32 %v441, %v446
      %450 = vst [vmem:[%s233] sm:$0xff] %v448
      %451 = vst [vmem:[%s233 + $0x8] sm:$0xff] %v449
      %s452 = smul.u32 2, %s20
      %p453 = scmp.lt.s32.totalorder %s19, 1
      %s454 = scalar_select %p453, %s19, 1
      %p455 = scmp.lt.s32.totalorder %s452, 1
      %s456 = scalar_select %p455, %s452, 1
      %s457 = smul.addr %s454, 2
      %s458 = sadd.s32 %s456, %s457
      %s459 = smul.addr %s458, 8
      %s460 = scalar_lea.vmem %s4, %s459
      // Predicated region
      $region37: #{conv_forward.1} parent=35 // pred_check
        %p461 = pneg %p138
      $region38: #{conv_forward.1} parent=35 // pred_check_branch
        %463 = sbr.rel (%p461) target = $region40
      $region39: #{conv_forward.1} parent=35 // pred_region
        %s464 = smul.u32 2, %s20
      $region40: #{conv_forward.1} parent=35 // pred_fallthru
        _
    $region36: #{conv_forward.1} parent=5 // pred_fallthru
      _
    %p465 = scmp.le.s32.totalorder 2, %s10
    // Predicated region
    $region41: #{conv_forward.1} parent=5 // pred_check
      %p466 = pneg %p465
    $region42: #{conv_forward.1} parent=5 // pred_check_branch
      %468 = sbr.rel (%p466) target = $region44
    $region43: #{conv_forward.1} parent=5 // pred_region
      %s469 = ssub.s32 %s10, 2
      // Predicated region
      $region45: #{conv_forward.1} parent=43 // pred_check
        %p470 = pneg %p144
      $region46: #{conv_forward.1} parent=43 // pred_check_branch
        %472 = sbr.rel (%p470) target = $region48
      $region47: #{conv_forward.1} parent=43 // pred_region
        %s473 = smul.u32 2, %s22
        %p474 = scmp.lt.s32.totalorder %s21, 1
        %s475 = scalar_select %p474, %s21, 1
        %p476 = scmp.lt.s32.totalorder %s473, 1
        %s477 = scalar_select %p476, %s473, 1
        %s478 = smul.addr %s475, 2
        %s479 = sadd.s32 %s477, %s478
        %s480 = smul.addr %s479, 8
        %s481 = scalar_lea.vmem %s4, %s480
      $region48: #{conv_forward.1} parent=43 // pred_fallthru
        _
    $region44: #{conv_forward.1} parent=5 // pred_fallthru
      _
  $region6: #{conv_forward.1} parent=0 // loop_footer
    %s14 = sadd.s32 1, %s10
  $region7: #{conv_forward.1} parent=0 // loop_footer_branch
    %9 = sbr.rel target = $region3
  $region8: #{conv_forward.1} parent=0 // loop_exit
    _

</llo_original>
